<compile_context>
chip_gen: v7x
topology: tpu7x:2x2x1
jax: 0.10.0
libtpu: 0.0.40
codegen_flags: <defaults>
</compile_context>

<pallas_src>
import math
import jax
import jax.numpy as jnp
from jax.experimental import pallas as pl
from jax.experimental.pallas import tpu as pltpu


def _attention_kernel(x_ref, w_ref, b_ref, v_ref, s_ref, y_ref, u_ref):
    # x_ref: (TMp, Hp)   lane-packed input rows (pack original rows per vreg row)
    # w_ref: (Hp, Hp)    block-diagonal kron(I_pack, Wref^T)
    # b_ref: (1, Hp)     Wref bias tiled across the pack segments
    # v_ref: (1, Hp)     attention vector v tiled across the pack segments
    # s_ref: (Hp, pack)  segment-sum selector (ones on the j-th H-lane block, col j)
    # y_ref: (TMp, Hp)   lane-dense linear output (ref_out in packed layout)
    # u_ref: (TMp, pack) attention logits, one per original row
    y = jnp.dot(x_ref[...], w_ref[...], preferred_element_type=jnp.float32)
    y = y + b_ref[...]
    y_ref[...] = y.astype(y_ref.dtype)

    # tanh on the EUP, elementwise scale on the VPU, tiny segment-sum on the MXU.
    t = jnp.tanh(y) * v_ref[...]
    u = jnp.dot(t, s_ref[...], preferred_element_type=jnp.float32)
    u_ref[...] = u.astype(u_ref.dtype)


def _round_up(x, m):
    return (x + m - 1) // m * m


def _pick_tile_rows(n_rows, row_align, max_tile_rows=8192, min_grid=4):
    """Pick a large, TPU-friendly row tile (in *original* rows).

    - Small problems: one full-extent block (rows rounded up to `row_align`).
    - Larger problems: 128-aligned tiles sized so the grid has ~min_grid+ steps
      (megacore sharding), capped at max_tile_rows.  8192 x 128 lanes x 4 B =
      1 MiB per packed buffer -- comfortably under the VMEM limit even
      double-buffered with the second (y) output.
    """
    if n_rows <= 1024:
        return _round_up(max(n_rows, 1), row_align)
    tile = (n_rows // min_grid) // 128 * 128
    tile = max(128, min(tile, max_tile_rows))
    return _round_up(tile, row_align)


def attention_forward(batch_size, ref, w_ref_T, b_ref, v, *, tile_rows=None,
                      max_tile_rows=8192):
    """Pallas equivalent of Attention.forward(q=batch_size, ref).

    ref:      (B*S, H) float32
    w_ref_T:  (H, H)   float32  (already transposed: y = x @ w_ref_T + b)
    b_ref:    (H,)     float32
    v:        (H,)     float32
    Returns (u, ref_out) with u: (B, S), ref_out: (B, S, H).
    """
    n_rows, hidden = ref.shape
    size = n_rows // batch_size
    dtype = ref.dtype

    # Lane-packing factor: how many original rows share one 128-lane vreg row.
    pack = 128 // hidden if (hidden <= 128 and 128 % hidden == 0) else 1
    hp = hidden * pack          # packed lane width (128 when hidden divides 128)
    row_align = 8 * pack        # packed sublane dim must stay a multiple of 8

    if tile_rows is None:
        tile_rows = _pick_tile_rows(n_rows, row_align, max_tile_rows=max_tile_rows)
    else:
        tile_rows = _round_up(tile_rows, row_align)

    padded_rows = _round_up(n_rows, tile_rows)
    ref_p = ref
    if padded_rows != n_rows:
        # Tail handled by wrapper-side zero padding; padded rows are discarded.
        ref_p = jnp.pad(ref, ((0, padded_rows - n_rows), (0, 0)))

    # Pack `pack` consecutive rows side-by-side along lanes (free row-major view).
    ref_pk = ref_p.reshape(padded_rows // pack, hp)

    eye_p = jnp.eye(pack, dtype=dtype)
    w_blk = jnp.kron(eye_p, w_ref_T.astype(dtype))                  # (hp, hp)
    b_row = jnp.tile(b_ref.reshape(1, hidden).astype(dtype), (1, pack))  # (1, hp)
    v_row = jnp.tile(v.reshape(1, hidden).astype(dtype), (1, pack))      # (1, hp)
    sel = jnp.kron(eye_p, jnp.ones((hidden, 1), dtype=dtype))        # (hp, pack)

    tmp = tile_rows // pack     # packed rows per tile
    grid = (padded_rows // tile_rows,)

    y_pk, u_pk = pl.pallas_call(
        _attention_kernel,
        out_shape=(
            jax.ShapeDtypeStruct((padded_rows // pack, hp), dtype),
            jax.ShapeDtypeStruct((padded_rows // pack, pack), dtype),
        ),
        grid_spec=pltpu.PrefetchScalarGridSpec(
            num_scalar_prefetch=0,
            grid=grid,
            in_specs=[
                pl.BlockSpec((tmp, hp), lambda i: (i, 0)),
                pl.BlockSpec((hp, hp), lambda i: (0, 0)),
                pl.BlockSpec((1, hp), lambda i: (0, 0)),
                pl.BlockSpec((1, hp), lambda i: (0, 0)),
                pl.BlockSpec((hp, pack), lambda i: (0, 0)),
            ],
            out_specs=[
                pl.BlockSpec((tmp, hp), lambda i: (i, 0)),
                pl.BlockSpec((tmp, pack), lambda i: (i, 0)),
            ],
        ),
        compiler_params=pltpu.CompilerParams(
            dimension_semantics=("parallel",)
        ),
    )(ref_pk, w_blk, b_row, v_row, sel)

    ref_out = y_pk.reshape(padded_rows, hidden)[:n_rows].reshape(
        batch_size, size, hidden)
    u = u_pk.reshape(padded_rows)[:n_rows].reshape(batch_size, size)
    return u, ref_out


if __name__ == "__main__":
    # Small shapes consistent with the module: batch=2, size(seq)=8, hidden=32.
    B, S, H = 2, 8, 32
    key = jax.random.PRNGKey(0)
    k_ref, k_w, k_b, k_v = jax.random.split(key, 4)

    bound = 1.0 / math.sqrt(H)
    ref = jax.random.normal(k_ref, (B * S, H), dtype=jnp.float32)
    # Deterministic parameter init mirroring nn.Linear / v init (uniform +-1/sqrt(H)).
    w = jax.random.uniform(k_w, (H, H), minval=-bound, maxval=bound, dtype=jnp.float32)
    b = jax.random.uniform(k_b, (H,), minval=-bound, maxval=bound, dtype=jnp.float32)
    v = jax.random.uniform(k_v, (H,), minval=-bound, maxval=bound, dtype=jnp.float32)

    # PyTorch Linear computes x @ W^T + b; pre-transpose so kernel does x @ w.
    w_T = w.T

    u, ref_out = attention_forward(B, ref, w_T, b, v)
    jax.block_until_ready((u, ref_out))

    # Pure-JAX reference check (small case: single block, padded tail).
    y_check = ref @ w_T + b
    u_check = jnp.tanh(y_check) @ v
    assert jnp.allclose(ref_out, y_check.reshape(B, S, H), atol=1e-5, rtol=1e-5)
    assert jnp.allclose(u, u_check.reshape(B, S), atol=1e-5, rtol=1e-5)

    # Also exercise the multi-tile path (128-aligned tiles + padded tail discarded).
    B2, S2 = 4, 300  # 1200 rows -> tile 256, grid 5, 80-row padded tail
    ref2 = jax.random.normal(jax.random.PRNGKey(1), (B2 * S2, H), dtype=jnp.float32)
    u2, ref_out2 = attention_forward(B2, ref2, w_T, b, v)
    jax.block_until_ready((u2, ref_out2))
    y2_check = ref2 @ w_T + b
    u2_check = jnp.tanh(y2_check) @ v
    assert jnp.allclose(ref_out2, y2_check.reshape(B2, S2, H), atol=1e-4, rtol=1e-4)
    assert jnp.allclose(u2, u2_check.reshape(B2, S2), atol=1e-4, rtol=1e-4)

    print("KERNEL_OK")
</pallas_src>

<mosaic_0001>
module attributes {stable_mosaic.version = 11 : i64} {
  func.func @_attention_kernel(%arg0: i32, %arg1: memref<8x128xf32, #tpu.memory_space<vmem>>, %arg2: memref<128x128xf32, #tpu.memory_space<vmem>>, %arg3: memref<1x128xf32, #tpu.memory_space<vmem>>, %arg4: memref<1x128xf32, #tpu.memory_space<vmem>>, %arg5: memref<128x4xf32, #tpu.memory_space<vmem>>, %arg6: memref<8x128xf32, #tpu.memory_space<vmem>>, %arg7: memref<8x4xf32, #tpu.memory_space<vmem>>) attributes {dimension_semantics = [#tpu.dimension_semantics<parallel>], iteration_bounds = array<i64: 1>, scalar_prefetch = 0 : i64, scratch_operands = 0 : i64, tpu.core_type = #tpu.core_type<tc>, window_params = [{transform_indices = @transform_0, window_bounds = array<i64: 8, 128>}, {pipeline_mode = #tpu.pipeline_mode<synchronous>, transform_indices = @transform_1, window_bounds = array<i64: 128, 128>}, {pipeline_mode = #tpu.pipeline_mode<synchronous>, transform_indices = @transform_2, window_bounds = array<i64: 1, 128>}, {pipeline_mode = #tpu.pipeline_mode<synchronous>, transform_indices = @transform_3, window_bounds = array<i64: 1, 128>}, {pipeline_mode = #tpu.pipeline_mode<synchronous>, transform_indices = @transform_4, window_bounds = array<i64: 128, 4>}, {transform_indices = @transform_5, window_bounds = array<i64: 8, 128>}, {transform_indices = @transform_6, window_bounds = array<i64: 8, 4>}]} {
    %c0 = arith.constant 0 : index
    %c0_0 = arith.constant 0 : index
    %0 = vector.load %arg1[%c0, %c0_0] : memref<8x128xf32, #tpu.memory_space<vmem>>, vector<8x128xf32>
    %c0_1 = arith.constant 0 : index
    %c0_2 = arith.constant 0 : index
    %1 = vector.load %arg2[%c0_1, %c0_2] : memref<128x128xf32, #tpu.memory_space<vmem>>, vector<128x128xf32>
    %cst = arith.constant dense<0.000000e+00> : vector<8x128xf32>
    %2 = tpu.matmul %0, %1, %cst {dimension_numbers = #tpu.dot_dimension_numbers<[1], [0], [0], [1], [0, 0, 1, 1], [], []>} : vector<8x128xf32>, vector<128x128xf32>, vector<8x128xf32> -> vector<8x128xf32>
    %c0_3 = arith.constant 0 : index
    %c0_4 = arith.constant 0 : index
    %3 = vector.load %arg3[%c0_3, %c0_4] : memref<1x128xf32, #tpu.memory_space<vmem>>, vector<1x128xf32>
    %4 = vector.broadcast %3 : vector<1x128xf32> to vector<8x128xf32>
    %5 = arith.addf %2, %4 : vector<8x128xf32>
    %c0_5 = arith.constant 0 : index
    %c0_6 = arith.constant 0 : index
    %6 = vector.load %arg6[%c0_5, %c0_6] : memref<8x128xf32, #tpu.memory_space<vmem>>, vector<8x128xf32>
    tpu.vector_store %arg6[%c0_5, %c0_6], %5 {strides = array<i32>} : memref<8x128xf32, #tpu.memory_space<vmem>>, vector<8x128xf32>,
    %7 = math.tanh %5 : vector<8x128xf32>
    %c0_7 = arith.constant 0 : index
    %c0_8 = arith.constant 0 : index
    %8 = vector.load %arg4[%c0_7, %c0_8] : memref<1x128xf32, #tpu.memory_space<vmem>>, vector<1x128xf32>
    %9 = vector.broadcast %8 : vector<1x128xf32> to vector<8x128xf32>
    %10 = arith.mulf %7, %9 : vector<8x128xf32>
    %c0_9 = arith.constant 0 : index
    %c0_10 = arith.constant 0 : index
    %11 = vector.load %arg5[%c0_9, %c0_10] : memref<128x4xf32, #tpu.memory_space<vmem>>, vector<128x4xf32>
    %cst_11 = arith.constant dense<0.000000e+00> : vector<8x4xf32>
    %12 = tpu.matmul %10, %11, %cst_11 {dimension_numbers = #tpu.dot_dimension_numbers<[1], [0], [0], [1], [0, 0, 1, 1], [], []>} : vector<8x128xf32>, vector<128x4xf32>, vector<8x4xf32> -> vector<8x4xf32>
    %c0_12 = arith.constant 0 : index
    %c0_13 = arith.constant 0 : index
    %13 = vector.load %arg7[%c0_12, %c0_13] : memref<8x4xf32, #tpu.memory_space<vmem>>, vector<8x4xf32>
    tpu.vector_store %arg7[%c0_12, %c0_13], %12 {strides = array<i32>} : memref<8x4xf32, #tpu.memory_space<vmem>>, vector<8x4xf32>,
    return
  }
  func.func @transform_0(%arg0: i32) -> (i32, i32) {
    %c0_i32 = arith.constant 0 : i32
    %c0_i32_0 = arith.constant 0 : i32
    return %arg0, %c0_i32 : i32, i32
  }
  func.func @transform_1(%arg0: i32) -> (i32, i32) {
    %c0_i32 = arith.constant 0 : i32
    %c0_i32_0 = arith.constant 0 : i32
    %c0_i32_1 = arith.constant 0 : i32
    return %c0_i32, %c0_i32_0 : i32, i32
  }
  func.func @transform_2(%arg0: i32) -> (i32, i32) {
    %c0_i32 = arith.constant 0 : i32
    %c0_i32_0 = arith.constant 0 : i32
    %c0_i32_1 = arith.constant 0 : i32
    return %c0_i32, %c0_i32_0 : i32, i32
  }
  func.func @transform_3(%arg0: i32) -> (i32, i32) {
    %c0_i32 = arith.constant 0 : i32
    %c0_i32_0 = arith.constant 0 : i32
    %c0_i32_1 = arith.constant 0 : i32
    return %c0_i32, %c0_i32_0 : i32, i32
  }
  func.func @transform_4(%arg0: i32) -> (i32, i32) {
    %c0_i32 = arith.constant 0 : i32
    %c0_i32_0 = arith.constant 0 : i32
    %c0_i32_1 = arith.constant 0 : i32
    return %c0_i32, %c0_i32_0 : i32, i32
  }
  func.func @transform_5(%arg0: i32) -> (i32, i32) {
    %c0_i32 = arith.constant 0 : i32
    %c0_i32_0 = arith.constant 0 : i32
    return %arg0, %c0_i32 : i32, i32
  }
  func.func @transform_6(%arg0: i32) -> (i32, i32) {
    %c0_i32 = arith.constant 0 : i32
    %c0_i32_0 = arith.constant 0 : i32
    return %arg0, %c0_i32 : i32, i32
  }
}

</mosaic_0001>

<llo_original>
// kernel: tpu_custom_call.1
$region0: #{tpu_custom_call.1}
  #allocation0 [shape = 'u32[]', space=smem, size = 0x4, offset = 0x4, fixed_abs, tag = 'smem constant byte address 0x4 - core index']
  #allocation1 [shape = 'u32[144,128]{1,0:T(1,128)}', space=vmem, size = 0x12000, scoped, tag = 'internal scratch']
  %s0 = inlined_call_operand.hbm [shape: f32[8,128], index: 0, kind: input, shape index: {}]
  %s1 = inlined_call_operand.vmem [shape: f32[128,128], index: 1, kind: input, shape index: {}]
  %s2 = inlined_call_operand.vmem [shape: f32[1,128], index: 2, kind: input, shape index: {}]
  %s3 = inlined_call_operand.vmem [shape: f32[1,128], index: 3, kind: input, shape index: {}]
  %s4 = inlined_call_operand.vmem [shape: f32[128,4], index: 4, kind: input, shape index: {}]
  %s5 = inlined_call_operand.hbm [shape: f32[8,128], index: 5, kind: output, shape index: {0}]
  %s6 = inlined_call_operand.vmem [shape: f32[8,4], index: 6, kind: output, shape index: {1}]
  %7 = xla_tuple %s5, %s6
  %s8 = sld [smem:[#allocation0]]
  $region42: #{tpu_custom_call.1} parent=0
    _
  %s10 = ssub.s32 1, %s8
  %s11 = scalar_select 0, %s10, %s8
  $region1: #{tpu_custom_call.1} parent=0
    #allocation2 [shape = 'u8[4096]{0}', space=vmem, size = 0x1000, scoped, tag = 'input window, operand 0, single buffered']
    #allocation3 [shape = 's32[1]{0}', space=sflag, size = 0x4, scoped, tag = 'scoped memory for tpu_custom_call.1']
    #allocation4 [shape = 's32[1]{0}', space=sflag, size = 0x4, scoped, tag = 'scoped memory for tpu_custom_call.1']
    #allocation5 [shape = 'u8[4096]{0}', space=vmem, size = 0x1000, scoped, tag = 'output window, operand 0, single buffered']
    %12 = vsyncpa [#allocation3], 0
    %13 = vsyncpa [#allocation4], 0
    // Predicated region
    $region2: #{tpu_custom_call.1} parent=1 // pred_check
      _
    $region3: #{tpu_custom_call.1} parent=1 // pred_check_branch
      %15 = sbr.rel (0) target = $region5
    $region4: #{tpu_custom_call.1} parent=1 // pred_region
      %s17 = ssub.s32 128, 128
      %18 = vsyncadd [#allocation3], %s17
      %s20 = sshll.u32 [#allocation2], 4
      %s21 = int_to_ptr.vmem [resolvable:$true] %s20
      %23 = dma.hbm_to_vmem [thread:$0]  %s0, 128, %s21, [#allocation3]
    $region5: #{tpu_custom_call.1} parent=1 // pred_fallthru
      _
    // Predicated region
    $region6: #{tpu_custom_call.1} parent=1 // pred_check
      _
    $region7: #{tpu_custom_call.1} parent=1 // pred_check_branch
      %25 = sbr.rel (0) target = $region9
    $region8: #{tpu_custom_call.1} parent=1 // pred_region
      _
    $region9: #{tpu_custom_call.1} parent=1 // pred_fallthru
      _
    // Predicated region
    $region10: #{tpu_custom_call.1} parent=1 // pred_check
      _
    $region11: #{tpu_custom_call.1} parent=1 // pred_check_branch
      %27 = sbr.rel (0) target = $region13
    $region12: #{tpu_custom_call.1} parent=1 // pred_region
      _
    $region13: #{tpu_custom_call.1} parent=1 // pred_fallthru
      _
    // Predicated region
    $region14: #{tpu_custom_call.1} parent=1 // pred_check
      _
    $region15: #{tpu_custom_call.1} parent=1 // pred_check_branch
      %29 = sbr.rel (0) target = $region17
    $region16: #{tpu_custom_call.1} parent=1 // pred_region
      _
    $region17: #{tpu_custom_call.1} parent=1 // pred_fallthru
      _
    // Predicated region
    $region18: #{tpu_custom_call.1} parent=1 // pred_check
      _
    $region19: #{tpu_custom_call.1} parent=1 // pred_check_branch
      %31 = sbr.rel (0) target = $region21
    $region20: #{tpu_custom_call.1} parent=1 // pred_region
      _
    $region21: #{tpu_custom_call.1} parent=1 // pred_fallthru
      _
    // Predicated region
    $region22: #{tpu_custom_call.1} parent=1 // pred_check
      _
    $region23: #{tpu_custom_call.1} parent=1 // pred_check_branch
      %33 = sbr.rel (0) target = $region25
    $region24: #{tpu_custom_call.1} parent=1 // pred_region
      %34 = dma.done [#allocation3], 128
    $region25: #{tpu_custom_call.1} parent=1 // pred_fallthru
      _
    %v35 = vld [vmem:[#allocation2] sm:$0xff]
    %v36 = vld [vmem:[%s1] sm:$0xff]
    %v37 = vld [vmem:[%s1 + $0x8] sm:$0xff]
    %v38 = vld [vmem:[%s1 + $0x10] sm:$0xff]
    %v39 = vld [vmem:[%s1 + $0x18] sm:$0xff]
    %v40 = vld [vmem:[%s1 + $0x20] sm:$0xff]
    %v41 = vld [vmem:[%s1 + $0x28] sm:$0xff]
    %v42 = vld [vmem:[%s1 + $0x30] sm:$0xff]
    %v43 = vld [vmem:[%s1 + $0x38] sm:$0xff]
    %v44 = vld [vmem:[%s1 + $0x40] sm:$0xff]
    %v45 = vld [vmem:[%s1 + $0x48] sm:$0xff]
    %v46 = vld [vmem:[%s1 + $0x50] sm:$0xff]
    %v47 = vld [vmem:[%s1 + $0x58] sm:$0xff]
    %v48 = vld [vmem:[%s1 + $0x60] sm:$0xff]
    %v49 = vld [vmem:[%s1 + $0x68] sm:$0xff]
    %v50 = vld [vmem:[%s1 + $0x70] sm:$0xff]
    %v51 = vld [vmem:[%s1 + $0x78] sm:$0xff]
    %v52 = vld [vmem:[%s2] sm:$0x1]
    %v54 = vlaneseq
    %v55 = vshrl.u32 %v54, 7
    %v56 = vsub.s32 0, %v55
    %v57 = vrot.slane %v52, %v56
    %59 = vmatprep.subr.mxu0 0.0
    %60 = vmatpush1.msra.mxu0 %v36
    %61 = vmatprep.subr.mxu0 0.0
    %62 = vmatpush1.msra.mxu0 %v37
    %63 = vmatprep.subr.mxu0 0.0
    %64 = vmatpush1.msra.mxu0 %v38
    %65 = vmatprep.subr.mxu0 0.0
    %66 = vmatpush1.msra.mxu0 %v39
    %67 = vmatprep.subr.mxu0 0.0
    %68 = vmatpush1.msra.mxu0 %v40
    %69 = vmatprep.subr.mxu0 0.0
    %70 = vmatpush1.msra.mxu0 %v41
    %71 = vmatprep.subr.mxu0 0.0
    %72 = vmatpush1.msra.mxu0 %v42
    %73 = vmatprep.subr.mxu0 0.0
    %74 = vmatpush1.msra.mxu0 %v43
    %75 = vmatprep.subr.mxu0 0.0
    %76 = vmatpush1.msra.mxu0 %v44
    %77 = vmatprep.subr.mxu0 0.0
    %78 = vmatpush1.msra.mxu0 %v45
    %79 = vmatprep.subr.mxu0 0.0
    %80 = vmatpush1.msra.mxu0 %v46
    %81 = vmatprep.subr.mxu0 0.0
    %82 = vmatpush1.msra.mxu0 %v47
    %83 = vmatprep.subr.mxu0 0.0
    %84 = vmatpush1.msra.mxu0 %v48
    %85 = vmatprep.subr.mxu0 0.0
    %86 = vmatpush1.msra.mxu0 %v49
    %87 = vmatprep.subr.mxu0 0.0
    %88 = vmatpush1.msra.mxu0 %v50
    %89 = vmatprep.subr.mxu0 0.0
    %90 = vmatpush1.msra.mxu0 %v51
    %91 = vmatprep.subr.mxu0 0.0
    %92 = vmatpush1.msra.mxu0 0.0
    %93 = vmatprep.subr.mxu0 0.0
    %94 = vmatpush1.msra.mxu0 0.0
    %95 = vmatprep.subr.mxu0 0.0
    %96 = vmatpush1.msra.mxu0 0.0
    %97 = vmatprep.subr.mxu0 0.0
    %98 = vmatpush1.msra.mxu0 0.0
    %99 = vmatprep.subr.mxu0 0.0
    %100 = vmatpush1.msra.mxu0 0.0
    %101 = vmatprep.subr.mxu0 0.0
    %102 = vmatpush1.msra.mxu0 0.0
    %103 = vmatprep.subr.mxu0 0.0
    %104 = vmatpush1.msra.mxu0 0.0
    %105 = vmatprep.subr.mxu0 0.0
    %106 = vmatpush1.msra.mxu0 0.0
    %107 = vmatprep.subr.mxu0 0.0
    %108 = vmatpush1.msra.mxu0 0.0
    %109 = vmatprep.subr.mxu0 0.0
    %110 = vmatpush1.msra.mxu0 0.0
    %111 = vmatprep.subr.mxu0 0.0
    %112 = vmatpush1.msra.mxu0 0.0
    %113 = vmatprep.subr.mxu0 0.0
    %114 = vmatpush1.msra.mxu0 0.0
    %115 = vmatprep.subr.mxu0 0.0
    %116 = vmatpush1.msra.mxu0 0.0
    %117 = vmatprep.subr.mxu0 0.0
    %118 = vmatpush1.msra.mxu0 0.0
    %119 = vmatprep.subr.mxu0 0.0
    %120 = vmatpush1.msra.mxu0 0.0
    %121 = vmatprep.subr.mxu0 0.0
    %122 = vmatpush1.msra.mxu0 0.0
    %123 = vmatprep.mubr.f32.mxu0 0.0
    %124 = vmatmul.mubr.f32.gmra.mrb[0].mxu0 %v35
    %v125 = vpop.f32.mrb[0].mxu0
    %v126 = vadd.f32 %v57, %v125
    %v127 = vpop.f32.mrb[0].mxu0
    %128 = vdwg.mxu0
    %129 = vst [vmem:[#allocation5] sm:$0xff] %v126
    %v130 = vtanh.pop %v126
    %v131 = vld [vmem:[%s3] sm:$0x1]
    %v133 = vlaneseq
    %v134 = vshrl.u32 %v133, 7
    %v135 = vsub.s32 0, %v134
    %v136 = vrot.slane %v131, %v135
    %v138 = vmul.f32 %v130, %v136
    %v139 = vld [vmem:[%s4] sm:$0xff]
    %v140 = vld [vmem:[%s4 + $0x8] sm:$0xff]
    %v141 = vld [vmem:[%s4 + $0x10] sm:$0xff]
    %v142 = vld [vmem:[%s4 + $0x18] sm:$0xff]
    %v143 = vld [vmem:[%s4 + $0x20] sm:$0xff]
    %v144 = vld [vmem:[%s4 + $0x28] sm:$0xff]
    %v145 = vld [vmem:[%s4 + $0x30] sm:$0xff]
    %v146 = vld [vmem:[%s4 + $0x38] sm:$0xff]
    %v147 = vld [vmem:[%s4 + $0x40] sm:$0xff]
    %v148 = vld [vmem:[%s4 + $0x48] sm:$0xff]
    %v149 = vld [vmem:[%s4 + $0x50] sm:$0xff]
    %v150 = vld [vmem:[%s4 + $0x58] sm:$0xff]
    %v151 = vld [vmem:[%s4 + $0x60] sm:$0xff]
    %v152 = vld [vmem:[%s4 + $0x68] sm:$0xff]
    %v153 = vld [vmem:[%s4 + $0x70] sm:$0xff]
    %v154 = vld [vmem:[%s4 + $0x78] sm:$0xff]
    %155 = vmatprep.subr.mxu0 0.0
    %156 = vmatpush1.msra.mxu0 %v139
    %157 = vmatprep.subr.mxu0 0.0
    %158 = vmatpush1.msra.mxu0 %v140
    %159 = vmatprep.subr.mxu0 0.0
    %160 = vmatpush1.msra.mxu0 %v141
    %161 = vmatprep.subr.mxu0 0.0
    %162 = vmatpush1.msra.mxu0 %v142
    %163 = vmatprep.subr.mxu0 0.0
    %164 = vmatpush1.msra.mxu0 %v143
    %165 = vmatprep.subr.mxu0 0.0
    %166 = vmatpush1.msra.mxu0 %v144
    %167 = vmatprep.subr.mxu0 0.0
    %168 = vmatpush1.msra.mxu0 %v145
    %169 = vmatprep.subr.mxu0 0.0
    %170 = vmatpush1.msra.mxu0 %v146
    %171 = vmatprep.subr.mxu0 0.0
    %172 = vmatpush1.msra.mxu0 %v147
    %173 = vmatprep.subr.mxu0 0.0
    %174 = vmatpush1.msra.mxu0 %v148
    %175 = vmatprep.subr.mxu0 0.0
    %176 = vmatpush1.msra.mxu0 %v149
    %177 = vmatprep.subr.mxu0 0.0
    %178 = vmatpush1.msra.mxu0 %v150
    %179 = vmatprep.subr.mxu0 0.0
    %180 = vmatpush1.msra.mxu0 %v151
    %181 = vmatprep.subr.mxu0 0.0
    %182 = vmatpush1.msra.mxu0 %v152
    %183 = vmatprep.subr.mxu0 0.0
    %184 = vmatpush1.msra.mxu0 %v153
    %185 = vmatprep.subr.mxu0 0.0
    %186 = vmatpush1.msra.mxu0 %v154
    %187 = vmatprep.subr.mxu0 0.0
    %188 = vmatpush1.msra.mxu0 0.0
    %189 = vmatprep.subr.mxu0 0.0
    %190 = vmatpush1.msra.mxu0 0.0
    %191 = vmatprep.subr.mxu0 0.0
    %192 = vmatpush1.msra.mxu0 0.0
    %193 = vmatprep.subr.mxu0 0.0
    %194 = vmatpush1.msra.mxu0 0.0
    %195 = vmatprep.subr.mxu0 0.0
    %196 = vmatpush1.msra.mxu0 0.0
    %197 = vmatprep.subr.mxu0 0.0
    %198 = vmatpush1.msra.mxu0 0.0
    %199 = vmatprep.subr.mxu0 0.0
    %200 = vmatpush1.msra.mxu0 0.0
    %201 = vmatprep.subr.mxu0 0.0
    %202 = vmatpush1.msra.mxu0 0.0
    %203 = vmatprep.subr.mxu0 0.0
    %204 = vmatpush1.msra.mxu0 0.0
    %205 = vmatprep.subr.mxu0 0.0
    %206 = vmatpush1.msra.mxu0 0.0
    %207 = vmatprep.subr.mxu0 0.0
    %208 = vmatpush1.msra.mxu0 0.0
    %209 = vmatprep.subr.mxu0 0.0
    %210 = vmatpush1.msra.mxu0 0.0
    %211 = vmatprep.subr.mxu0 0.0
    %212 = vmatpush1.msra.mxu0 0.0
    %213 = vmatprep.subr.mxu0 0.0
    %214 = vmatpush1.msra.mxu0 0.0
    %215 = vmatprep.subr.mxu0 0.0
    %216 = vmatpush1.msra.mxu0 0.0
    %217 = vmatprep.subr.mxu0 0.0
    %218 = vmatpush1.msra.mxu0 0.0
    %219 = vmatprep.mubr.f32.mxu0 0.0
    %220 = vmatmul.mubr.f32.gmra.mrb[0].mxu0 %v138
    %v221 = vpop.f32.mrb[0].mxu0
    %v222 = vadd.f32 0.0, %v221
    %v223 = vpop.f32.mrb[0].mxu0
    %224 = vdwg.mxu0
    %vm225 = vcmask 31744
    %226 = vst.msk [vmem:[%s6] sm:$0xff] %vm225, %v222
    // Predicated region
    $region26: #{tpu_custom_call.1} parent=1 // pred_check
      _
    $region27: #{tpu_custom_call.1} parent=1 // pred_check_branch
      %228 = sbr.rel (0) target = $region29
    $region28: #{tpu_custom_call.1} parent=1 // pred_region
      %s230 = ssub.s32 128, 128
      %231 = vsyncadd [#allocation4], %s230
      %s233 = sshll.u32 [#allocation5], 4
      %s234 = int_to_ptr.vmem [resolvable:$true] %s233
      %236 = dma.vmem_to_hbm [thread:$0]  %s234, 128, %s5, [#allocation4]
    $region29: #{tpu_custom_call.1} parent=1 // pred_fallthru
      _
    // Predicated region
    $region30: #{tpu_custom_call.1} parent=1 // pred_check
      _
    $region31: #{tpu_custom_call.1} parent=1 // pred_check_branch
      %238 = sbr.rel (0) target = $region33
    $region32: #{tpu_custom_call.1} parent=1 // pred_region
      _
    $region33: #{tpu_custom_call.1} parent=1 // pred_fallthru
      _
    // Predicated region
    $region34: #{tpu_custom_call.1} parent=1 // pred_check
      _
    $region35: #{tpu_custom_call.1} parent=1 // pred_check_branch
      %240 = sbr.rel (0) target = $region37
    $region36: #{tpu_custom_call.1} parent=1 // pred_region
      %241 = dma.done [#allocation4], 128
    $region37: #{tpu_custom_call.1} parent=1 // pred_fallthru
      _
    // Predicated region
    $region38: #{tpu_custom_call.1} parent=1 // pred_check
      _
    $region39: #{tpu_custom_call.1} parent=1 // pred_check_branch
      %243 = sbr.rel (0) target = $region41
    $region40: #{tpu_custom_call.1} parent=1 // pred_region
      _
    $region41: #{tpu_custom_call.1} parent=1 // pred_fallthru
      _
    %244 = vsyncpa [#allocation3], 1
    %245 = vsyncpa [#allocation4], 1

</llo_original>
